<compile_context>
chip_gen: v7x
topology: tpu7x:2x2x1
jax: 0.10.0
libtpu: 0.0.40
codegen_flags: <defaults>
</compile_context>

<pallas_src>
import jax
import jax.numpy as jnp
from jax.experimental import pallas as pl
from jax.experimental.pallas import tpu as pltpu


def critic_kernel(state_ref, action_ref,
                  ws14_ref, wa14_ref, b14_ref,
                  w2_ref, b2_ref, w5_ref, b5_ref,
                  w36_ref, b36_ref,
                  q_ref):
    """One batch-tile of the twin-Q forward pass, fully VMEM-resident."""
    H = w2_ref.shape[0]

    # Layer 1 (both heads fused along the output axis): sa @ [W1|W4] + [b1|b4]
    s = state_ref[...].astype(jnp.bfloat16)
    a = action_ref[...].astype(jnp.bfloat16)
    h = jnp.dot(s, ws14_ref[...], preferred_element_type=jnp.float32)
    h = h + jnp.dot(a, wa14_ref[...], preferred_element_type=jnp.float32)
    h = jnp.maximum(h + b14_ref[...], 0.0)              # (bm, 2H) f32, one ReLU pass
    hb = h.astype(jnp.bfloat16)                          # one cast, then zero-cost slices

    # Split heads at a 128-lane-aligned boundary (static slice, no data movement).
    h1 = hb[:, :H]
    h2 = hb[:, H:]

    # Layer 2 per head (bf16 weights, f32 accumulate).
    g1 = jnp.maximum(
        jnp.dot(h1, w2_ref[...], preferred_element_type=jnp.float32) + b2_ref[...], 0.0)
    g2 = jnp.maximum(
        jnp.dot(h2, w5_ref[...], preferred_element_type=jnp.float32) + b5_ref[...], 0.0)

    # Layer 3: N=1 linear done on the VPU/XLU (multiply + cross-lane reduce)
    # instead of an under-utilized MXU pass.  w36 row 0 = w3^T, row 1 = w6^T.
    w36 = w36_ref[...]                                   # (2, H), f32
    q1 = jnp.sum(g1 * w36[0:1, :], axis=-1, keepdims=True) + b36_ref[0]
    q2 = jnp.sum(g2 * w36[1:2, :], axis=-1, keepdims=True) + b36_ref[1]

    # Single (bm, 2) output tile: column 0 = Q1, column 1 = Q2.
    q_ref[:, 0:1] = q1
    q_ref[:, 1:2] = q2


def make_critic_params(key, state_dim, action_dim, hidden=256):
    """PyTorch-style init U(-1/sqrt(fan_in), 1/sqrt(fan_in)), packed for the kernel.

    Returns:
      ws14: (state_dim,  2H) bf16   rows of [W1 | W4] for the state features
      wa14: (action_dim, 2H) bf16   rows of [W1 | W4] for the action features
      b14:  (1, 2H) f32             [b1 | b4]
      w2:   (H, H)  bf16, b2: (1, H) f32
      w5:   (H, H)  bf16, b5: (1, H) f32
      w36:  (2, H)  f32             row 0 = w3^T, row 1 = w6^T
      b36:  (2,)    f32             [b3, b6]
    """
    in_dim = state_dim + action_dim
    H = hidden
    dims = [(in_dim, H), (H, H), (H, 1),   # l1, l2, l3
            (in_dim, H), (H, H), (H, 1)]   # l4, l5, l6
    raw = []
    for (fan_in, fan_out) in dims:
        key, kw, kb = jax.random.split(key, 3)
        bound = 1.0 / float(fan_in) ** 0.5
        w = jax.random.uniform(kw, (fan_in, fan_out), jnp.float32, -bound, bound)
        b = jax.random.uniform(kb, (1, fan_out), jnp.float32, -bound, bound)
        raw += [w, b]
    w1, b1, w2, b2, w3, b3, w4, b4, w5, b5, w6, b6 = raw

    w14 = jnp.concatenate([w1, w4], axis=1)                  # (in_dim, 2H)
    ws14 = w14[:state_dim, :].astype(jnp.bfloat16)
    wa14 = w14[state_dim:, :].astype(jnp.bfloat16)
    b14 = jnp.concatenate([b1, b4], axis=1)                  # (1, 2H) f32
    w36 = jnp.concatenate([w3.T, w6.T], axis=0)              # (2, H) f32
    b36 = jnp.concatenate([b3.reshape(-1), b6.reshape(-1)])  # (2,) f32

    return [ws14, wa14, b14,
            w2.astype(jnp.bfloat16), b2,
            w5.astype(jnp.bfloat16), b5,
            w36, b36]


def critic_forward(state, action, params, *, block_b=128):
    ws14, wa14, b14, w2, b2, w5, b5, w36, b36 = params
    B, state_dim = state.shape
    action_dim = action.shape[1]
    H = w2.shape[0]

    bm = min(B, block_b)          # block_b is a multiple of 8; bm==B otherwise (full dim)
    grid = (pl.cdiv(B, bm),)

    # Advisory cost estimate: treat as a cheap op so XLA schedules around it.
    flops = 2 * B * ((state_dim + action_dim) * 2 * H + 2 * H * H + 2 * H)
    bytes_accessed = (
        (ws14.size + wa14.size + w2.size + w5.size) * 2           # bf16 weights
        + (b14.size + b2.size + b5.size + w36.size + b36.size) * 4
        + (state.size + action.size) * 4 + B * 2 * 4)

    q12 = pl.pallas_call(
        critic_kernel,
        out_shape=jax.ShapeDtypeStruct((B, 2), jnp.float32),
        grid=grid,
        in_specs=[
            pl.BlockSpec((bm, state_dim), lambda i: (i, 0)),      # state tile
            pl.BlockSpec((bm, action_dim), lambda i: (i, 0)),     # action tile
            pl.BlockSpec((state_dim, 2 * H), lambda i: (0, 0)),   # Ws (VMEM-resident)
            pl.BlockSpec((action_dim, 2 * H), lambda i: (0, 0)),  # Wa
            pl.BlockSpec((1, 2 * H), lambda i: (0, 0)),           # b1|b4
            pl.BlockSpec((H, H), lambda i: (0, 0)),               # W2
            pl.BlockSpec((1, H), lambda i: (0, 0)),               # b2
            pl.BlockSpec((H, H), lambda i: (0, 0)),               # W5
            pl.BlockSpec((1, H), lambda i: (0, 0)),               # b5
            pl.BlockSpec((2, H), lambda i: (0, 0)),               # w3^T / w6^T rows
            pl.BlockSpec(memory_space=pltpu.MemorySpace.SMEM),    # b3, b6 scalars
        ],
        out_specs=pl.BlockSpec((bm, 2), lambda i: (i, 0)),
        compiler_params=pltpu.CompilerParams(
            dimension_semantics=("parallel",)),
        cost_estimate=pl.CostEstimate(
            flops=flops, transcendentals=0, bytes_accessed=bytes_accessed),
    )(state, action, ws14, wa14, b14, w2, b2, w5, b5, w36, b36)

    return q12[:, 0:1], q12[:, 1:2]


def critic_q1(state, action, params, *, block_b=128):
    """Mirrors Critic.Q1 (compute is tiny; dominant cost is the shared weight DMA)."""
    return critic_forward(state, action, params, block_b=block_b)[0]


def critic_forward_ref(state, action, params):
    """Pure-JAX reference mirroring the kernel math (bf16 weights, f32 accum)."""
    ws14, wa14, b14, w2, b2, w5, b5, w36, b36 = params
    H = w2.shape[0]
    s = state.astype(jnp.bfloat16)
    a = action.astype(jnp.bfloat16)
    h = (jnp.dot(s, ws14, preferred_element_type=jnp.float32)
         + jnp.dot(a, wa14, preferred_element_type=jnp.float32) + b14)
    h = jnp.maximum(h, 0.0)
    hb = h.astype(jnp.bfloat16)
    h1 = hb[:, :H]
    h2 = hb[:, H:]
    g1 = jnp.maximum(jnp.dot(h1, w2, preferred_element_type=jnp.float32) + b2, 0.0)
    g2 = jnp.maximum(jnp.dot(h2, w5, preferred_element_type=jnp.float32) + b5, 0.0)
    q1 = jnp.sum(g1 * w36[0:1, :], axis=-1, keepdims=True) + b36[0]
    q2 = jnp.sum(g2 * w36[1:2, :], axis=-1, keepdims=True) + b36[1]
    return q1, q2


if __name__ == "__main__":
    key = jax.random.PRNGKey(0)
    k_state, k_action, k_params = jax.random.split(key, 3)

    batch, state_dim, action_dim = 8, 24, 8   # small MuJoCo-like sizes
    state = jax.random.normal(k_state, (batch, state_dim), jnp.float32)
    action = jax.random.normal(k_action, (batch, action_dim), jnp.float32)
    params = make_critic_params(k_params, state_dim, action_dim)

    q1, q2 = jax.jit(critic_forward)(state, action, params)
    jax.block_until_ready((q1, q2))

    q1_ref, q2_ref = critic_forward_ref(state, action, params)
    assert q1.shape == (batch, 1) and q2.shape == (batch, 1)
    assert jnp.allclose(q1, q1_ref, atol=1e-3, rtol=1e-3)
    assert jnp.allclose(q2, q2_ref, atol=1e-3, rtol=1e-3)

    # Q1-only path (same kernel, wrapper slice) matches the twin output.
    q1_only = jax.jit(critic_q1)(state, action, params)
    jax.block_until_ready(q1_only)
    assert jnp.allclose(q1_only, q1, atol=1e-6, rtol=1e-6)

    print("KERNEL_OK")
</pallas_src>

<mosaic_0001>
module attributes {stable_mosaic.version = 11 : i64} {
  func.func @critic_kernel(%arg0: i32, %arg1: memref<8x24xf32, #tpu.memory_space<vmem>>, %arg2: memref<8x8xf32, #tpu.memory_space<vmem>>, %arg3: memref<24x512xbf16, #tpu.memory_space<vmem>>, %arg4: memref<8x512xbf16, #tpu.memory_space<vmem>>, %arg5: memref<1x512xf32, #tpu.memory_space<vmem>>, %arg6: memref<256x256xbf16, #tpu.memory_space<vmem>>, %arg7: memref<1x256xf32, #tpu.memory_space<vmem>>, %arg8: memref<256x256xbf16, #tpu.memory_space<vmem>>, %arg9: memref<1x256xf32, #tpu.memory_space<vmem>>, %arg10: memref<2x256xf32, #tpu.memory_space<vmem>>, %arg11: memref<2xf32, #tpu.memory_space<smem>>, %arg12: memref<8x2xf32, #tpu.memory_space<vmem>>) attributes {dimension_semantics = [#tpu.dimension_semantics<parallel>], iteration_bounds = array<i64: 1>, scalar_prefetch = 0 : i64, scratch_operands = 0 : i64, tpu.core_type = #tpu.core_type<tc>, window_params = [{transform_indices = @transform_0, window_bounds = array<i64: 8, 24>}, {transform_indices = @transform_1, window_bounds = array<i64: 8, 8>}, {pipeline_mode = #tpu.pipeline_mode<synchronous>, transform_indices = @transform_2, window_bounds = array<i64: 24, 512>}, {pipeline_mode = #tpu.pipeline_mode<synchronous>, transform_indices = @transform_3, window_bounds = array<i64: 8, 512>}, {pipeline_mode = #tpu.pipeline_mode<synchronous>, transform_indices = @transform_4, window_bounds = array<i64: 1, 512>}, {pipeline_mode = #tpu.pipeline_mode<synchronous>, transform_indices = @transform_5, window_bounds = array<i64: 256, 256>}, {pipeline_mode = #tpu.pipeline_mode<synchronous>, transform_indices = @transform_6, window_bounds = array<i64: 1, 256>}, {pipeline_mode = #tpu.pipeline_mode<synchronous>, transform_indices = @transform_7, window_bounds = array<i64: 256, 256>}, {pipeline_mode = #tpu.pipeline_mode<synchronous>, transform_indices = @transform_8, window_bounds = array<i64: 1, 256>}, {pipeline_mode = #tpu.pipeline_mode<synchronous>, transform_indices = @transform_9, window_bounds = array<i64: 2, 256>}, {transform_indices = @transform_10, window_bounds = array<i64: 2>}, {transform_indices = @transform_11, window_bounds = array<i64: 8, 2>}]} {
    %c0 = arith.constant 0 : index
    %c0_0 = arith.constant 0 : index
    %0 = vector.load %arg1[%c0, %c0_0] : memref<8x24xf32, #tpu.memory_space<vmem>>, vector<8x24xf32>
    %1 = arith.truncf %0 : vector<8x24xf32> to vector<8x24xbf16>
    %c0_1 = arith.constant 0 : index
    %c0_2 = arith.constant 0 : index
    %2 = vector.load %arg2[%c0_1, %c0_2] : memref<8x8xf32, #tpu.memory_space<vmem>>, vector<8x8xf32>
    %3 = arith.truncf %2 : vector<8x8xf32> to vector<8x8xbf16>
    %c0_3 = arith.constant 0 : index
    %c0_4 = arith.constant 0 : index
    %4 = vector.load %arg3[%c0_3, %c0_4] : memref<24x512xbf16, #tpu.memory_space<vmem>>, vector<24x512xbf16>
    %cst = arith.constant dense<0.000000e+00> : vector<8x512xf32>
    %5 = tpu.matmul %1, %4, %cst {dimension_numbers = #tpu.dot_dimension_numbers<[1], [0], [0], [1], [0, 0, 1, 1], [], []>} : vector<8x24xbf16>, vector<24x512xbf16>, vector<8x512xf32> -> vector<8x512xf32>
    %c0_5 = arith.constant 0 : index
    %c0_6 = arith.constant 0 : index
    %6 = vector.load %arg4[%c0_5, %c0_6] : memref<8x512xbf16, #tpu.memory_space<vmem>>, vector<8x512xbf16>
    %cst_7 = arith.constant dense<0.000000e+00> : vector<8x512xf32>
    %7 = tpu.matmul %3, %6, %cst_7 {dimension_numbers = #tpu.dot_dimension_numbers<[1], [0], [0], [1], [0, 0, 1, 1], [], []>} : vector<8x8xbf16>, vector<8x512xbf16>, vector<8x512xf32> -> vector<8x512xf32>
    %8 = arith.addf %5, %7 : vector<8x512xf32>
    %c0_8 = arith.constant 0 : index
    %c0_9 = arith.constant 0 : index
    %9 = vector.load %arg5[%c0_8, %c0_9] : memref<1x512xf32, #tpu.memory_space<vmem>>, vector<1x512xf32>
    %10 = vector.broadcast %9 : vector<1x512xf32> to vector<8x512xf32>
    %11 = arith.addf %8, %10 : vector<8x512xf32>
    %cst_10 = arith.constant 0.000000e+00 : f32
    %12 = vector.broadcast %cst_10 : f32 to vector<8x512xf32>
    %13 = arith.maximumf %11, %12 : vector<8x512xf32>
    %14 = arith.truncf %13 : vector<8x512xf32> to vector<8x512xbf16>
    %15 = vector.extract_strided_slice %14 {offsets = [0, 0], sizes = [8, 256], strides = [1, 1]} : vector<8x512xbf16> to vector<8x256xbf16>
    %16 = vector.extract_strided_slice %14 {offsets = [0, 256], sizes = [8, 256], strides = [1, 1]} : vector<8x512xbf16> to vector<8x256xbf16>
    %c0_11 = arith.constant 0 : index
    %c0_12 = arith.constant 0 : index
    %17 = vector.load %arg6[%c0_11, %c0_12] : memref<256x256xbf16, #tpu.memory_space<vmem>>, vector<256x256xbf16>
    %cst_13 = arith.constant dense<0.000000e+00> : vector<8x256xf32>
    %18 = tpu.matmul %15, %17, %cst_13 {dimension_numbers = #tpu.dot_dimension_numbers<[1], [0], [0], [1], [0, 0, 1, 1], [], []>} : vector<8x256xbf16>, vector<256x256xbf16>, vector<8x256xf32> -> vector<8x256xf32>
    %c0_14 = arith.constant 0 : index
    %c0_15 = arith.constant 0 : index
    %19 = vector.load %arg7[%c0_14, %c0_15] : memref<1x256xf32, #tpu.memory_space<vmem>>, vector<1x256xf32>
    %20 = vector.broadcast %19 : vector<1x256xf32> to vector<8x256xf32>
    %21 = arith.addf %18, %20 : vector<8x256xf32>
    %cst_16 = arith.constant 0.000000e+00 : f32
    %22 = vector.broadcast %cst_16 : f32 to vector<8x256xf32>
    %23 = arith.maximumf %21, %22 : vector<8x256xf32>
    %c0_17 = arith.constant 0 : index
    %c0_18 = arith.constant 0 : index
    %24 = vector.load %arg8[%c0_17, %c0_18] : memref<256x256xbf16, #tpu.memory_space<vmem>>, vector<256x256xbf16>
    %cst_19 = arith.constant dense<0.000000e+00> : vector<8x256xf32>
    %25 = tpu.matmul %16, %24, %cst_19 {dimension_numbers = #tpu.dot_dimension_numbers<[1], [0], [0], [1], [0, 0, 1, 1], [], []>} : vector<8x256xbf16>, vector<256x256xbf16>, vector<8x256xf32> -> vector<8x256xf32>
    %c0_20 = arith.constant 0 : index
    %c0_21 = arith.constant 0 : index
    %26 = vector.load %arg9[%c0_20, %c0_21] : memref<1x256xf32, #tpu.memory_space<vmem>>, vector<1x256xf32>
    %27 = vector.broadcast %26 : vector<1x256xf32> to vector<8x256xf32>
    %28 = arith.addf %25, %27 : vector<8x256xf32>
    %cst_22 = arith.constant 0.000000e+00 : f32
    %29 = vector.broadcast %cst_22 : f32 to vector<8x256xf32>
    %30 = arith.maximumf %28, %29 : vector<8x256xf32>
    %c0_23 = arith.constant 0 : index
    %c0_24 = arith.constant 0 : index
    %31 = vector.load %arg10[%c0_23, %c0_24] : memref<2x256xf32, #tpu.memory_space<vmem>>, vector<2x256xf32>
    %32 = vector.extract_strided_slice %31 {offsets = [0, 0], sizes = [1, 256], strides = [1, 1]} : vector<2x256xf32> to vector<1x256xf32>
    %33 = vector.broadcast %32 : vector<1x256xf32> to vector<8x256xf32>
    %34 = arith.mulf %23, %33 : vector<8x256xf32>
    %cst_25 = arith.constant dense<0.000000e+00> : vector<8xf32>
    %35 = vector.multi_reduction <add>, %34, %cst_25 [1] : vector<8x256xf32> to vector<8xf32>
    %36 = vector.shape_cast %35 : vector<8xf32> to vector<8x1xf32>
    %c0_26 = arith.constant 0 : index
    %37 = memref.load %arg11[%c0_26] : memref<2xf32, #tpu.memory_space<smem>>
    %38 = vector.broadcast %37 : f32 to vector<8x1xf32>
    %39 = arith.addf %36, %38 : vector<8x1xf32>
    %40 = vector.extract_strided_slice %31 {offsets = [1, 0], sizes = [1, 256], strides = [1, 1]} : vector<2x256xf32> to vector<1x256xf32>
    %41 = vector.broadcast %40 : vector<1x256xf32> to vector<8x256xf32>
    %42 = arith.mulf %30, %41 : vector<8x256xf32>
    %cst_27 = arith.constant dense<0.000000e+00> : vector<8xf32>
    %43 = vector.multi_reduction <add>, %42, %cst_27 [1] : vector<8x256xf32> to vector<8xf32>
    %44 = vector.shape_cast %43 : vector<8xf32> to vector<8x1xf32>
    %c1 = arith.constant 1 : index
    %45 = memref.load %arg11[%c1] : memref<2xf32, #tpu.memory_space<smem>>
    %46 = vector.broadcast %45 : f32 to vector<8x1xf32>
    %47 = arith.addf %44, %46 : vector<8x1xf32>
    %c0_28 = arith.constant 0 : index
    %c0_29 = arith.constant 0 : index
    %48 = vector.load %arg12[%c0_28, %c0_29] : memref<8x2xf32, #tpu.memory_space<vmem>>, vector<8x1xf32>
    tpu.vector_store %arg12[%c0_28, %c0_29], %39 {strides = array<i32>} : memref<8x2xf32, #tpu.memory_space<vmem>>, vector<8x1xf32>,
    %c0_30 = arith.constant 0 : index
    %c1_31 = arith.constant 1 : index
    %49 = vector.load %arg12[%c0_30, %c1_31] : memref<8x2xf32, #tpu.memory_space<vmem>>, vector<8x1xf32>
    tpu.vector_store %arg12[%c0_30, %c1_31], %47 {strides = array<i32>} : memref<8x2xf32, #tpu.memory_space<vmem>>, vector<8x1xf32>,
    return
  }
  func.func @transform_0(%arg0: i32) -> (i32, i32) {
    %c0_i32 = arith.constant 0 : i32
    %c0_i32_0 = arith.constant 0 : i32
    return %arg0, %c0_i32 : i32, i32
  }
  func.func @transform_1(%arg0: i32) -> (i32, i32) {
    %c0_i32 = arith.constant 0 : i32
    %c0_i32_0 = arith.constant 0 : i32
    return %arg0, %c0_i32 : i32, i32
  }
  func.func @transform_2(%arg0: i32) -> (i32, i32) {
    %c0_i32 = arith.constant 0 : i32
    %c0_i32_0 = arith.constant 0 : i32
    %c0_i32_1 = arith.constant 0 : i32
    return %c0_i32, %c0_i32_0 : i32, i32
  }
  func.func @transform_3(%arg0: i32) -> (i32, i32) {
    %c0_i32 = arith.constant 0 : i32
    %c0_i32_0 = arith.constant 0 : i32
    %c0_i32_1 = arith.constant 0 : i32
    return %c0_i32, %c0_i32_0 : i32, i32
  }
  func.func @transform_4(%arg0: i32) -> (i32, i32) {
    %c0_i32 = arith.constant 0 : i32
    %c0_i32_0 = arith.constant 0 : i32
    %c0_i32_1 = arith.constant 0 : i32
    return %c0_i32, %c0_i32_0 : i32, i32
  }
  func.func @transform_5(%arg0: i32) -> (i32, i32) {
    %c0_i32 = arith.constant 0 : i32
    %c0_i32_0 = arith.constant 0 : i32
    %c0_i32_1 = arith.constant 0 : i32
    return %c0_i32, %c0_i32_0 : i32, i32
  }
  func.func @transform_6(%arg0: i32) -> (i32, i32) {
    %c0_i32 = arith.constant 0 : i32
    %c0_i32_0 = arith.constant 0 : i32
    %c0_i32_1 = arith.constant 0 : i32
    return %c0_i32, %c0_i32_0 : i32, i32
  }
  func.func @transform_7(%arg0: i32) -> (i32, i32) {
    %c0_i32 = arith.constant 0 : i32
    %c0_i32_0 = arith.constant 0 : i32
    %c0_i32_1 = arith.constant 0 : i32
    return %c0_i32, %c0_i32_0 : i32, i32
  }
  func.func @transform_8(%arg0: i32) -> (i32, i32) {
    %c0_i32 = arith.constant 0 : i32
    %c0_i32_0 = arith.constant 0 : i32
    %c0_i32_1 = arith.constant 0 : i32
    return %c0_i32, %c0_i32_0 : i32, i32
  }
  func.func @transform_9(%arg0: i32) -> (i32, i32) {
    %c0_i32 = arith.constant 0 : i32
    %c0_i32_0 = arith.constant 0 : i32
    %c0_i32_1 = arith.constant 0 : i32
    return %c0_i32, %c0_i32_0 : i32, i32
  }
  func.func @transform_10(%arg0: i32) -> i32 {
    %c0_i32 = arith.constant 0 : i32
    %c0_i32_0 = arith.constant 0 : i32
    return %c0_i32 : i32
  }
  func.func @transform_11(%arg0: i32) -> (i32, i32) {
    %c0_i32 = arith.constant 0 : i32
    %c0_i32_0 = arith.constant 0 : i32
    return %arg0, %c0_i32 : i32, i32
  }
}

</mosaic_0001>

<llo_original>
// kernel: critic_forward.1
$region0: #{critic_forward.1}
  #allocation0 [shape = 'u32[]', space=smem, size = 0x4, offset = 0x4, fixed_abs, tag = 'smem constant byte address 0x4 - core index']
  #allocation1 [shape = 'u32[144,128]{1,0:T(1,128)}', space=vmem, size = 0x12000, scoped, tag = 'internal scratch']
  %s0 = inlined_call_operand.hbm [shape: f32[8,24], index: 0, kind: input, shape index: {}]
  %s1 = inlined_call_operand.hbm [shape: f32[8,8], index: 1, kind: input, shape index: {}]
  %s2 = inlined_call_operand.hbm [shape: bf16[24,512], index: 2, kind: input, shape index: {}]
  %s3 = inlined_call_operand.hbm [shape: bf16[8,512], index: 3, kind: input, shape index: {}]
  %s4 = inlined_call_operand.vmem [shape: f32[1,512], index: 4, kind: input, shape index: {}]
  %s5 = inlined_call_operand.hbm [shape: bf16[256,256], index: 5, kind: input, shape index: {}]
  %s6 = inlined_call_operand.vmem [shape: f32[1,256], index: 6, kind: input, shape index: {}]
  %s7 = inlined_call_operand.hbm [shape: bf16[256,256], index: 7, kind: input, shape index: {}]
  %s8 = inlined_call_operand.vmem [shape: f32[1,256], index: 8, kind: input, shape index: {}]
  %s9 = inlined_call_operand.vmem [shape: f32[2,256], index: 9, kind: input, shape index: {}]
  %s10 = inlined_call_operand.vmem [shape: f32[2], index: 10, kind: input, shape index: {}]
  %s11 = inlined_call_operand.vmem [shape: f32[8,2], index: 11, kind: output, shape index: {}]
  %s12 = sld [smem:[#allocation0]]
  $region82: #{critic_forward.1} parent=0
    _
  %s14 = ssub.s32 1, %s12
  %s15 = scalar_select 0, %s14, %s12
  $region1: #{critic_forward.1} parent=0
    #allocation2 [shape = 'u8[4096]{0}', space=vmem, size = 0x1000, scoped, tag = 'input window, operand 0, single buffered']
    #allocation3 [shape = 's32[1]{0}', space=sflag, size = 0x4, scoped, tag = 'scoped memory for critic_forward.1']
    #allocation4 [shape = 's32[1]{0}', space=sflag, size = 0x4, scoped, tag = 'scoped memory for critic_forward.1']
    #allocation5 [shape = 'u8[4096]{0}', space=vmem, size = 0x1000, scoped, tag = 'input window, operand 1, single buffered']
    #allocation6 [shape = 's32[1]{0}', space=sflag, size = 0x4, scoped, tag = 'scoped memory for critic_forward.1']
    #allocation7 [shape = 'u8[24576]{0}', space=vmem, size = 0x6000, scoped, tag = 'input window, operand 2, single buffered']
    #allocation8 [shape = 'u8[8192]{0}', space=vmem, size = 0x2000, scoped, tag = 'input window, operand 3, single buffered']
    #allocation9 [shape = 's32[1]{0}', space=sflag, size = 0x4, scoped, tag = 'scoped memory for critic_forward.1']
    #allocation10 [shape = 'u8[131072]{0}', space=vmem, size = 0x20000, scoped, tag = 'input window, operand 5, single buffered']
    #allocation11 [shape = 'u8[131072]{0}', space=vmem, size = 0x20000, scoped, tag = 'input window, operand 7, single buffered']
    #allocation12 [shape = 's32[1]{0}', space=sflag, size = 0x4, scoped, tag = 'scoped memory for critic_forward.1']
    #allocation13 [shape = 'u8[512]{0}', space=smem, size = 0x200, scoped, tag = 'input window, operand 10, single buffered']
    %16 = vsyncpa [#allocation3], 0
    %17 = vsyncpa [#allocation6], 0
    %18 = vsyncpa [#allocation9], 0
    %19 = vsyncpa [#allocation12], 0
    %20 = vsyncpa [#allocation4], 0
    // Predicated region
    $region2: #{critic_forward.1} parent=1 // pred_check
      _
    $region3: #{critic_forward.1} parent=1 // pred_check_branch
      %22 = sbr.rel (0) target = $region5
    $region4: #{critic_forward.1} parent=1 // pred_region
      %s24 = ssub.s32 128, 128
      %25 = vsyncadd [#allocation3], %s24
      %s27 = sshll.u32 [#allocation2], 4
      %s28 = int_to_ptr.vmem [resolvable:$true] %s27
      %30 = dma.hbm_to_vmem [thread:$0]  %s0, 128, %s28, [#allocation3]
    $region5: #{critic_forward.1} parent=1 // pred_fallthru
      _
    // Predicated region
    $region6: #{critic_forward.1} parent=1 // pred_check
      _
    $region7: #{critic_forward.1} parent=1 // pred_check_branch
      %32 = sbr.rel (0) target = $region9
    $region8: #{critic_forward.1} parent=1 // pred_region
      %s34 = ssub.s32 128, 128
      %35 = vsyncadd [#allocation6], %s34
      %s37 = sshll.u32 [#allocation5], 4
      %s38 = int_to_ptr.vmem [resolvable:$true] %s37
      %40 = dma.hbm_to_vmem [thread:$0]  %s1, 128, %s38, [#allocation6]
    $region9: #{critic_forward.1} parent=1 // pred_fallthru
      _
    // Predicated region
    $region10: #{critic_forward.1} parent=1 // pred_check
      _
    $region11: #{critic_forward.1} parent=1 // pred_check_branch
      %42 = sbr.rel (0) target = $region13
    $region12: #{critic_forward.1} parent=1 // pred_region
      %s44 = ssub.s32 768, 768
      %45 = vsyncadd [#allocation6], %s44
      %s46 = sshll.u32 [#allocation7], 4
      %s47 = int_to_ptr.vmem [resolvable:$true] %s46
      %52 = dma.hbm_to_vmem [thread:$0]  %s2, 768, %s47, [#allocation6], 256, 256, 16
    $region13: #{critic_forward.1} parent=1 // pred_fallthru
      _
    // Predicated region
    $region14: #{critic_forward.1} parent=1 // pred_check
      _
    $region15: #{critic_forward.1} parent=1 // pred_check_branch
      %54 = sbr.rel (0) target = $region17
    $region16: #{critic_forward.1} parent=1 // pred_region
      %s56 = ssub.s32 256, 256
      %57 = vsyncadd [#allocation9], %s56
      %s59 = sshll.u32 [#allocation8], 4
      %s60 = int_to_ptr.vmem [resolvable:$true] %s59
      %62 = dma.hbm_to_vmem [thread:$0]  %s3, 256, %s60, [#allocation9]
    $region17: #{critic_forward.1} parent=1 // pred_fallthru
      _
    // Predicated region
    $region18: #{critic_forward.1} parent=1 // pred_check
      _
    $region19: #{critic_forward.1} parent=1 // pred_check_branch
      %64 = sbr.rel (0) target = $region21
    $region20: #{critic_forward.1} parent=1 // pred_region
      _
    $region21: #{critic_forward.1} parent=1 // pred_fallthru
      _
    // Predicated region
    $region22: #{critic_forward.1} parent=1 // pred_check
      _
    $region23: #{critic_forward.1} parent=1 // pred_check_branch
      %66 = sbr.rel (0) target = $region25
    $region24: #{critic_forward.1} parent=1 // pred_region
      %s68 = ssub.s32 4096, 4096
      %69 = vsyncadd [#allocation9], %s68
      %s70 = sshll.u32 [#allocation10], 4
      %s71 = int_to_ptr.vmem [resolvable:$true] %s70
      %76 = dma.hbm_to_vmem [thread:$0]  %s5, 4096, %s71, [#allocation9], 128, 128, 8
    $region25: #{critic_forward.1} parent=1 // pred_fallthru
      _
    // Predicated region
    $region26: #{critic_forward.1} parent=1 // pred_check
      _
    $region27: #{critic_forward.1} parent=1 // pred_check_branch
      %78 = sbr.rel (0) target = $region29
    $region28: #{critic_forward.1} parent=1 // pred_region
      _
    $region29: #{critic_forward.1} parent=1 // pred_fallthru
      _
    // Predicated region
    $region30: #{critic_forward.1} parent=1 // pred_check
      _
    $region31: #{critic_forward.1} parent=1 // pred_check_branch
      %80 = sbr.rel (0) target = $region33
    $region32: #{critic_forward.1} parent=1 // pred_region
      %s82 = ssub.s32 4096, 4096
      %83 = vsyncadd [#allocation12], %s82
      %s84 = sshll.u32 [#allocation11], 4
      %s85 = int_to_ptr.vmem [resolvable:$true] %s84
      %90 = dma.hbm_to_vmem [thread:$0]  %s7, 4096, %s85, [#allocation12], 128, 128, 8
    $region33: #{critic_forward.1} parent=1 // pred_fallthru
      _
    // Predicated region
    $region34: #{critic_forward.1} parent=1 // pred_check
      _
    $region35: #{critic_forward.1} parent=1 // pred_check_branch
      %92 = sbr.rel (0) target = $region37
    $region36: #{critic_forward.1} parent=1 // pred_region
      _
    $region37: #{critic_forward.1} parent=1 // pred_fallthru
      _
    // Predicated region
    $region38: #{critic_forward.1} parent=1 // pred_check
      _
    $region39: #{critic_forward.1} parent=1 // pred_check_branch
      %94 = sbr.rel (0) target = $region41
    $region40: #{critic_forward.1} parent=1 // pred_region
      _
    $region41: #{critic_forward.1} parent=1 // pred_fallthru
      _
    // Predicated region
    $region42: #{critic_forward.1} parent=1 // pred_check
      _
    $region43: #{critic_forward.1} parent=1 // pred_check_branch
      %96 = sbr.rel (0) target = $region45
    $region44: #{critic_forward.1} parent=1 // pred_region
      %s98 = ssub.s32 16, 16
      %99 = vsyncadd [#allocation4], %s98
      %s101 = sshll.u32 %s10, 4
      %s102 = int_to_ptr.vmem [resolvable:$true] %s101
      %104 = dma.vmem_to_smem %s102, 16, [#allocation13], [#allocation4]
    $region45: #{critic_forward.1} parent=1 // pred_fallthru
      _
    // Predicated region
    $region46: #{critic_forward.1} parent=1 // pred_check
      _
    $region47: #{critic_forward.1} parent=1 // pred_check_branch
      %106 = sbr.rel (0) target = $region49
    $region48: #{critic_forward.1} parent=1 // pred_region
      %107 = dma.done [#allocation3], 128
    $region49: #{critic_forward.1} parent=1 // pred_fallthru
      _
    // Predicated region
    $region50: #{critic_forward.1} parent=1 // pred_check
      _
    $region51: #{critic_forward.1} parent=1 // pred_check_branch
      %109 = sbr.rel (0) target = $region53
    $region52: #{critic_forward.1} parent=1 // pred_region
      %110 = dma.done [#allocation6], 128
    $region53: #{critic_forward.1} parent=1 // pred_fallthru
      _
    // Predicated region
    $region54: #{critic_forward.1} parent=1 // pred_check
      _
    $region55: #{critic_forward.1} parent=1 // pred_check_branch
      %112 = sbr.rel (0) target = $region57
    $region56: #{critic_forward.1} parent=1 // pred_region
      %113 = dma.done [#allocation6], 768
    $region57: #{critic_forward.1} parent=1 // pred_fallthru
      _
    // Predicated region
    $region58: #{critic_forward.1} parent=1 // pred_check
      _
    $region59: #{critic_forward.1} parent=1 // pred_check_branch
      %115 = sbr.rel (0) target = $region61
    $region60: #{critic_forward.1} parent=1 // pred_region
      %116 = dma.done [#allocation9], 256
    $region61: #{critic_forward.1} parent=1 // pred_fallthru
      _
    // Predicated region
    $region62: #{critic_forward.1} parent=1 // pred_check
      _
    $region63: #{critic_forward.1} parent=1 // pred_check_branch
      %118 = sbr.rel (0) target = $region65
    $region64: #{critic_forward.1} parent=1 // pred_region
      %119 = dma.done [#allocation9], 4096
    $region65: #{critic_forward.1} parent=1 // pred_fallthru
      _
    // Predicated region
    $region66: #{critic_forward.1} parent=1 // pred_check
      _
    $region67: #{critic_forward.1} parent=1 // pred_check_branch
      %121 = sbr.rel (0) target = $region69
    $region68: #{critic_forward.1} parent=1 // pred_region
      %122 = dma.done [#allocation12], 4096
    $region69: #{critic_forward.1} parent=1 // pred_fallthru
      _
    // Predicated region
    $region70: #{critic_forward.1} parent=1 // pred_check
      _
    $region71: #{critic_forward.1} parent=1 // pred_check_branch
      %124 = sbr.rel (0) target = $region73
    $region72: #{critic_forward.1} parent=1 // pred_region
      %125 = dma.done [#allocation4], 16
    $region73: #{critic_forward.1} parent=1 // pred_fallthru
      _
    %126 = sfence
    %v128 = vld [vmem:[#allocation2] sm:$0xff]
    %v129 = vpack.c.bf16 %v128, %v128
    %v130 = vld [vmem:[#allocation5] sm:$0xff]
    %v131 = vpack.c.bf16 %v130, %v130
    %v132 = vld [vmem:[#allocation7] sm:$0xff]
    %v133 = vld [vmem:[#allocation7 + $0x8] sm:$0xff]
    %v134 = vld [vmem:[#allocation7 + $0x10] sm:$0xff]
    %v135 = vld [vmem:[#allocation7 + $0x18] sm:$0xff]
    %v136 = vld [vmem:[#allocation7 + $0x20] sm:$0xff]
    %v137 = vld [vmem:[#allocation7 + $0x28] sm:$0xff]
    %v138 = vld [vmem:[#allocation8] sm:$0xff]
    %v139 = vld [vmem:[#allocation8 + $0x8] sm:$0xff]
    %v142 = vunpack.c.l.b16 %v138
    %v143 = vunpack.c.h.b16 %v138
    %v144 = vunpack.c.l.b16 %v139
    %v145 = vunpack.c.h.b16 %v139
    %v146 = vpack.c.b16 %v142, %v142
    %v147 = vpack.c.b16 %v143, %v143
    %v148 = vpack.c.b16 %v144, %v144
    %v149 = vpack.c.b16 %v145, %v145
    %vm150 = vcmask 64512
    %v152 = vsel %vm150, %v131, 0
    %vm154 = vcmask 1043456
    %v156 = vsel %vm154, %v146, 0
    %v159 = vsel %vm154, %v147, 0
    %v162 = vsel %vm154, %v148, 0
    %v165 = vsel %vm154, %v149, 0
    %167 = vmatprep.subr.bf16.mxu0 %v159
    %168 = vmatpush1.bf16.msra.mxu0 %v156
    %169 = vmatprep.subr.bf16.mxu0 0
    %170 = vmatpush1.bf16.msra.mxu0 0
    %171 = vmatprep.subr.bf16.mxu0 0
    %172 = vmatpush1.bf16.msra.mxu0 0
    %173 = vmatprep.subr.bf16.mxu0 0
    %174 = vmatpush1.bf16.msra.mxu0 0
    %175 = vmatprep.subr.bf16.mxu0 0
    %176 = vmatpush1.bf16.msra.mxu0 0
    %177 = vmatprep.subr.bf16.mxu0 0
    %178 = vmatpush1.bf16.msra.mxu0 0
    %179 = vmatprep.subr.bf16.mxu0 0
    %180 = vmatpush1.bf16.msra.mxu0 0
    %181 = vmatprep.subr.bf16.mxu0 0
    %182 = vmatpush1.bf16.msra.mxu0 0
    %183 = vmatprep.subr.bf16.mxu0 0
    %184 = vmatpush1.bf16.msra.mxu0 0
    %185 = vmatprep.subr.bf16.mxu0 0
    %186 = vmatpush1.bf16.msra.mxu0 0
    %187 = vmatprep.subr.bf16.mxu0 0
    %188 = vmatpush1.bf16.msra.mxu0 0
    %189 = vmatprep.subr.bf16.mxu0 0
    %190 = vmatpush1.bf16.msra.mxu0 0
    %191 = vmatprep.subr.bf16.mxu0 0
    %192 = vmatpush1.bf16.msra.mxu0 0
    %193 = vmatprep.subr.bf16.mxu0 0
    %194 = vmatpush1.bf16.msra.mxu0 0
    %195 = vmatprep.subr.bf16.mxu0 0
    %196 = vmatpush1.bf16.msra.mxu0 0
    %197 = vmatprep.subr.bf16.mxu0 0
    %198 = vmatpush1.bf16.msra.mxu0 0
    %199 = vmatprep.mubr.bf16.mxu0 0
    %200 = vmatmul.mubr.bf16.gmra.mrb[0].mxu0 %v152
    %v201 = vpop.f32.mrb[0].mxu0
    %v202 = vadd.f32 0.0, %v201
    %v203 = vpop.f32.mrb[0].mxu0
    %v204 = vadd.f32 0.0, %v203
    %v205 = vpop.f32.mrb[0].mxu0
    %v206 = vpop.f32.mrb[0].mxu0
    %207 = vdwg.mxu0
    %208 = vmatprep.subr.bf16.mxu0 %v165
    %209 = vmatpush1.bf16.msra.mxu0 %v162
    %210 = vmatprep.subr.bf16.mxu0 0
    %211 = vmatpush1.bf16.msra.mxu0 0
    %212 = vmatprep.subr.bf16.mxu0 0
    %213 = vmatpush1.bf16.msra.mxu0 0
    %214 = vmatprep.subr.bf16.mxu0 0
    %215 = vmatpush1.bf16.msra.mxu0 0
    %216 = vmatprep.subr.bf16.mxu0 0
    %217 = vmatpush1.bf16.msra.mxu0 0
    %218 = vmatprep.subr.bf16.mxu0 0
    %219 = vmatpush1.bf16.msra.mxu0 0
    %220 = vmatprep.subr.bf16.mxu0 0
    %221 = vmatpush1.bf16.msra.mxu0 0
    %222 = vmatprep.subr.bf16.mxu0 0
    %223 = vmatpush1.bf16.msra.mxu0 0
    %224 = vmatprep.subr.bf16.mxu0 0
    %225 = vmatpush1.bf16.msra.mxu0 0
    %226 = vmatprep.subr.bf16.mxu0 0
    %227 = vmatpush1.bf16.msra.mxu0 0
    %228 = vmatprep.subr.bf16.mxu0 0
    %229 = vmatpush1.bf16.msra.mxu0 0
    %230 = vmatprep.subr.bf16.mxu0 0
    %231 = vmatpush1.bf16.msra.mxu0 0
    %232 = vmatprep.subr.bf16.mxu0 0
    %233 = vmatpush1.bf16.msra.mxu0 0
    %234 = vmatprep.subr.bf16.mxu0 0
    %235 = vmatpush1.bf16.msra.mxu0 0
    %236 = vmatprep.subr.bf16.mxu0 0
    %237 = vmatpush1.bf16.msra.mxu0 0
    %238 = vmatprep.subr.bf16.mxu0 0
    %239 = vmatpush1.bf16.msra.mxu0 0
    %240 = vmatprep.mubr.bf16.mxu0 0
    %241 = vmatmul.mubr.bf16.gmra.mrb[0].mxu0 %v152
    %v242 = vpop.f32.mrb[0].mxu0
    %v243 = vadd.f32 0.0, %v242
    %v244 = vpop.f32.mrb[0].mxu0
    %v245 = vadd.f32 0.0, %v244
    %v246 = vpop.f32.mrb[0].mxu0
    %v247 = vpop.f32.mrb[0].mxu0
    %248 = vdwg.mxu0
    %v255 = vunpack.c.l.b16 %v132
    %v256 = vunpack.c.h.b16 %v132
    %v257 = vunpack.c.l.b16 %v133
    %v258 = vunpack.c.h.b16 %v133
    %v259 = vunpack.c.l.b16 %v134
    %v260 = vunpack.c.h.b16 %v134
    %v261 = vunpack.c.l.b16 %v135
    %v262 = vunpack.c.h.b16 %v135
    %v263 = vunpack.c.l.b16 %v136
    %v264 = vunpack.c.h.b16 %v136
    %v265 = vunpack.c.l.b16 %v137
    %v266 = vunpack.c.h.b16 %v137
    %v267 = vpack.c.b16 %v259, %v255
    %v268 = vpack.c.b16 %v260, %v256
    %v269 = vpack.c.b16 %v261, %v257
    %v270 = vpack.c.b16 %v262, %v258
    %v271 = vpack.c.b16 %v263, %v263
    %v272 = vpack.c.b16 %v264, %v264
    %v273 = vpack.c.b16 %v265, %v265
    %v274 = vpack.c.b16 %v266, %v266
    %vm279 = vcmask 195584
    %v281 = vsel %vm279, %v129, 0
    %v284 = vsel %vm154, %v271, 0
    %v287 = vsel %vm154, %v272, 0
    %v290 = vsel %vm154, %v273, 0
    %v293 = vsel %vm154, %v274, 0
    %295 = vmatprep.subr.bf16.mxu0 %v268
    %296 = vmatpush1.bf16.msra.mxu0 %v267
    %297 = vmatprep.subr.bf16.mxu0 %v287
    %298 = vmatpush1.bf16.msra.mxu0 %v284
    %299 = vmatprep.subr.bf16.mxu0 0
    %300 = vmatpush1.bf16.msra.mxu0 0
    %301 = vmatprep.subr.bf16.mxu0 0
    %302 = vmatpush1.bf16.msra.mxu0 0
    %303 = vmatprep.subr.bf16.mxu0 0
    %304 = vmatpush1.bf16.msra.mxu0 0
    %305 = vmatprep.subr.bf16.mxu0 0
    %306 = vmatpush1.bf16.msra.mxu0 0
    %307 = vmatprep.subr.bf16.mxu0 0
    %308 = vmatpush1.bf16.msra.mxu0 0
    %309 = vmatprep.subr.bf16.mxu0 0
    %310 = vmatpush1.bf16.msra.mxu0 0
    %311 = vmatprep.subr.bf16.mxu0 0
    %312 = vmatpush1.bf16.msra.mxu0 0
    %313 = vmatprep.subr.bf16.mxu0 0
    %314 = vmatpush1.bf16.msra.mxu0 0
    %315 = vmatprep.subr.bf16.mxu0 0
    %316 = vmatpush1.bf16.msra.mxu0 0
    %317 = vmatprep.subr.bf16.mxu0 0
    %318 = vmatpush1.bf16.msra.mxu0 0
    %319 = vmatprep.subr.bf16.mxu0 0
    %320 = vmatpush1.bf16.msra.mxu0 0
    %321 = vmatprep.subr.bf16.mxu0 0
    %322 = vmatpush1.bf16.msra.mxu0 0
    %323 = vmatprep.subr.bf16.mxu0 0
    %324 = vmatpush1.bf16.msra.mxu0 0
    %325 = vmatprep.subr.bf16.mxu0 0
    %326 = vmatpush1.bf16.msra.mxu0 0
    %327 = vmatprep.mubr.bf16.mxu0 0
    %328 = vmatmul.mubr.bf16.gmra.mrb[0].mxu0 %v281
    %v329 = vpop.f32.mrb[0].mxu0
    %v330 = vadd.f32 %v202, %v329
    %v331 = vpop.f32.mrb[0].mxu0
    %v332 = vadd.f32 %v204, %v331
    %v333 = vpop.f32.mrb[0].mxu0
    %v334 = vpop.f32.mrb[0].mxu0
    %335 = vdwg.mxu0
    %336 = vmatprep.subr.bf16.mxu0 %v270
    %337 = vmatpush1.bf16.msra.mxu0 %v269
    %338 = vmatprep.subr.bf16.mxu0 %v293
    %339 = vmatpush1.bf16.msra.mxu0 %v290
    %340 = vmatprep.subr.bf16.mxu0 0
    %341 = vmatpush1.bf16.msra.mxu0 0
    %342 = vmatprep.subr.bf16.mxu0 0
    %343 = vmatpush1.bf16.msra.mxu0 0
    %344 = vmatprep.subr.bf16.mxu0 0
    %345 = vmatpush1.bf16.msra.mxu0 0
    %346 = vmatprep.subr.bf16.mxu0 0
    %347 = vmatpush1.bf16.msra.mxu0 0
    %348 = vmatprep.subr.bf16.mxu0 0
    %349 = vmatpush1.bf16.msra.mxu0 0
    %350 = vmatprep.subr.bf16.mxu0 0
    %351 = vmatpush1.bf16.msra.mxu0 0
    %352 = vmatprep.subr.bf16.mxu0 0
    %353 = vmatpush1.bf16.msra.mxu0 0
    %354 = vmatprep.subr.bf16.mxu0 0
    %355 = vmatpush1.bf16.msra.mxu0 0
    %356 = vmatprep.subr.bf16.mxu0 0
    %357 = vmatpush1.bf16.msra.mxu0 0
    %358 = vmatprep.subr.bf16.mxu0 0
    %359 = vmatpush1.bf16.msra.mxu0 0
    %360 = vmatprep.subr.bf16.mxu0 0
    %361 = vmatpush1.bf16.msra.mxu0 0
    %362 = vmatprep.subr.bf16.mxu0 0
    %363 = vmatpush1.bf16.msra.mxu0 0
    %364 = vmatprep.subr.bf16.mxu0 0
    %365 = vmatpush1.bf16.msra.mxu0 0
    %366 = vmatprep.subr.bf16.mxu0 0
    %367 = vmatpush1.bf16.msra.mxu0 0
    %368 = vmatprep.mubr.bf16.mxu0 0
    %369 = vmatmul.mubr.bf16.gmra.mrb[0].mxu0 %v281
    %v370 = vpop.f32.mrb[0].mxu0
    %v371 = vadd.f32 %v243, %v370
    %v372 = vpop.f32.mrb[0].mxu0
    %v373 = vadd.f32 %v245, %v372
    %v374 = vpop.f32.mrb[0].mxu0
    %v375 = vpop.f32.mrb[0].mxu0
    %376 = vdwg.mxu0
    %v377 = vld [vmem:[%s4] sm:$0xf]
    %v379 = vlaneseq
    %v380 = vshrl.u32 %v379, 7
    %v381 = vsub.s32 0, %v380
    %v382 = vrot.slane %v377, %v381
    %v383 = vlaneseq
    %v384 = vshrl.u32 %v383, 7
    %v385 = vsub.s32 1, %v384
    %v386 = vrot.slane %v377, %v385
    %v387 = vlaneseq
    %v388 = vshrl.u32 %v387, 7
    %v389 = vsub.s32 2, %v388
    %v390 = vrot.slane %v377, %v389
    %v391 = vlaneseq
    %v392 = vshrl.u32 %v391, 7
    %v393 = vsub.s32 3, %v392
    %v394 = vrot.slane %v377, %v393
    %v399 = vadd.f32 %v330, %v382
    %v400 = vadd.f32 %v332, %v386
    %v401 = vadd.f32 %v371, %v390
    %v402 = vadd.f32 %v373, %v394
    %v403 = vmax.f32 %v399, 0.0
    %v404 = vmax.f32 %v400, 0.0
    %v405 = vmax.f32 %v401, 0.0
    %v406 = vmax.f32 %v402, 0.0
    %v407 = vpack.c.bf16 %v403, %v403
    %v408 = vpack.c.bf16 %v404, %v404
    %v409 = vpack.c.bf16 %v405, %v405
    %v410 = vpack.c.bf16 %v406, %v406
    %v411 = vld [vmem:[#allocation10] sm:$0xff]
    %v412 = vld [vmem:[#allocation10 + $0x8] sm:$0xff]
    %v413 = vld [vmem:[#allocation10 + $0x10] sm:$0xff]
    %v414 = vld [vmem:[#allocation10 + $0x18] sm:$0xff]
    %v415 = vld [vmem:[#allocation10 + $0x20] sm:$0xff]
    %v416 = vld [vmem:[#allocation10 + $0x28] sm:$0xff]
    %v417 = vld [vmem:[#allocation10 + $0x30] sm:$0xff]
    %v418 = vld [vmem:[#allocation10 + $0x38] sm:$0xff]
    %v419 = vld [vmem:[#allocation10 + $0x40] sm:$0xff]
    %v420 = vld [vmem:[#allocation10 + $0x48] sm:$0xff]
    %v421 = vld [vmem:[#allocation10 + $0x50] sm:$0xff]
    %v422 = vld [vmem:[#allocation10 + $0x58] sm:$0xff]
    %v423 = vld [vmem:[#allocation10 + $0x60] sm:$0xff]
    %v424 = vld [vmem:[#allocation10 + $0x68] sm:$0xff]
    %v425 = vld [vmem:[#allocation10 + $0x70] sm:$0xff]
    %v426 = vld [vmem:[#allocation10 + $0x78] sm:$0xff]
    %v427 = vld [vmem:[#allocation10 + $0x80] sm:$0xff]
    %v428 = vld [vmem:[#allocation10 + $0x88] sm:$0xff]
    %v429 = vld [vmem:[#allocation10 + $0x90] sm:$0xff]
    %v430 = vld [vmem:[#allocation10 + $0x98] sm:$0xff]
    %v431 = vld [vmem:[#allocation10 + $0xa0] sm:$0xff]
    %v432 = vld [vmem:[#allocation10 + $0xa8] sm:$0xff]
    %v433 = vld [vmem:[#allocation10 + $0xb0] sm:$0xff]
    %v434 = vld [vmem:[#allocation10 + $0xb8] sm:$0xff]
    %v435 = vld [vmem:[#allocation10 + $0xc0] sm:$0xff]
    %v436 = vld [vmem:[#allocation10 + $0xc8] sm:$0xff]
    %v437 = vld [vmem:[#allocation10 + $0xd0] sm:$0xff]
    %v438 = vld [vmem:[#allocation10 + $0xd8] sm:$0xff]
    %v439 = vld [vmem:[#allocation10 + $0xe0] sm:$0xff]
    %v440 = vld [vmem:[#allocation10 + $0xe8] sm:$0xff]
    %v441 = vld [vmem:[#allocation10 + $0xf0] sm:$0xff]
    %v442 = vld [vmem:[#allocation10 + $0xf8] sm:$0xff]
    %v443 = vld [vmem:[%s6] sm:$0x3]
    %v445 = vlaneseq
    %v446 = vshrl.u32 %v445, 7
    %v447 = vsub.s32 0, %v446
    %v448 = vrot.slane %v443, %v447
    %v449 = vlaneseq
    %v450 = vshrl.u32 %v449, 7
    %v451 = vsub.s32 1, %v450
    %v452 = vrot.slane %v443, %v451
    %v487 = vunpack.c.l.b16 %v411
    %v488 = vunpack.c.h.b16 %v411
    %v489 = vunpack.c.l.b16 %v412
    %v490 = vunpack.c.h.b16 %v412
    %v491 = vunpack.c.l.b16 %v413
    %v492 = vunpack.c.h.b16 %v413
    %v493 = vunpack.c.l.b16 %v414
    %v494 = vunpack.c.h.b16 %v414
    %v495 = vunpack.c.l.b16 %v415
    %v496 = vunpack.c.h.b16 %v415
    %v497 = vunpack.c.l.b16 %v416
    %v498 = vunpack.c.h.b16 %v416
    %v499 = vunpack.c.l.b16 %v417
    %v500 = vunpack.c.h.b16 %v417
    %v501 = vunpack.c.l.b16 %v418
    %v502 = vunpack.c.h.b16 %v418
    %v503 = vunpack.c.l.b16 %v419
    %v504 = vunpack.c.h.b16 %v419
    %v505 = vunpack.c.l.b16 %v420
    %v506 = vunpack.c.h.b16 %v420
    %v507 = vunpack.c.l.b16 %v421
    %v508 = vunpack.c.h.b16 %v421
    %v509 = vunpack.c.l.b16 %v422
    %v510 = vunpack.c.h.b16 %v422
    %v511 = vunpack.c.l.b16 %v423
    %v512 = vunpack.c.h.b16 %v423
    %v513 = vunpack.c.l.b16 %v424
    %v514 = vunpack.c.h.b16 %v424
    %v515 = vunpack.c.l.b16 %v425
    %v516 = vunpack.c.h.b16 %v425
    %v517 = vunpack.c.l.b16 %v426
    %v518 = vunpack.c.h.b16 %v426
    %v519 = vunpack.c.l.b16 %v427
    %v520 = vunpack.c.h.b16 %v427
    %v521 = vunpack.c.l.b16 %v428
    %v522 = vunpack.c.h.b16 %v428
    %v523 = vunpack.c.l.b16 %v429
    %v524 = vunpack.c.h.b16 %v429
    %v525 = vunpack.c.l.b16 %v430
    %v526 = vunpack.c.h.b16 %v430
    %v527 = vunpack.c.l.b16 %v431
    %v528 = vunpack.c.h.b16 %v431
    %v529 = vunpack.c.l.b16 %v432
    %v530 = vunpack.c.h.b16 %v432
    %v531 = vunpack.c.l.b16 %v433
    %v532 = vunpack.c.h.b16 %v433
    %v533 = vunpack.c.l.b16 %v434
    %v534 = vunpack.c.h.b16 %v434
    %v535 = vunpack.c.l.b16 %v435
    %v536 = vunpack.c.h.b16 %v435
    %v537 = vunpack.c.l.b16 %v436
    %v538 = vunpack.c.h.b16 %v436
    %v539 = vunpack.c.l.b16 %v437
    %v540 = vunpack.c.h.b16 %v437
    %v541 = vunpack.c.l.b16 %v438
    %v542 = vunpack.c.h.b16 %v438
    %v543 = vunpack.c.l.b16 %v439
    %v544 = vunpack.c.h.b16 %v439
    %v545 = vunpack.c.l.b16 %v440
    %v546 = vunpack.c.h.b16 %v440
    %v547 = vunpack.c.l.b16 %v441
    %v548 = vunpack.c.h.b16 %v441
    %v549 = vunpack.c.l.b16 %v442
    %v550 = vunpack.c.h.b16 %v442
    %v551 = vpack.c.b16 %v489, %v487
    %v552 = vpack.c.b16 %v490, %v488
    %v553 = vpack.c.b16 %v493, %v491
    %v554 = vpack.c.b16 %v494, %v492
    %v555 = vpack.c.b16 %v497, %v495
    %v556 = vpack.c.b16 %v498, %v496
    %v557 = vpack.c.b16 %v501, %v499
    %v558 = vpack.c.b16 %v502, %v500
    %v559 = vpack.c.b16 %v505, %v503
    %v560 = vpack.c.b16 %v506, %v504
    %v561 = vpack.c.b16 %v509, %v507
    %v562 = vpack.c.b16 %v510, %v508
    %v563 = vpack.c.b16 %v513, %v511
    %v564 = vpack.c.b16 %v514, %v512
    %v565 = vpack.c.b16 %v517, %v515
    %v566 = vpack.c.b16 %v518, %v516
    %v567 = vpack.c.b16 %v521, %v519
    %v568 = vpack.c.b16 %v522, %v520
    %v569 = vpack.c.b16 %v525, %v523
    %v570 = vpack.c.b16 %v526, %v524
    %v571 = vpack.c.b16 %v529, %v527
    %v572 = vpack.c.b16 %v530, %v528
    %v573 = vpack.c.b16 %v533, %v531
    %v574 = vpack.c.b16 %v534, %v532
    %v575 = vpack.c.b16 %v537, %v535
    %v576 = vpack.c.b16 %v538, %v536
    %v577 = vpack.c.b16 %v541, %v539
    %v578 = vpack.c.b16 %v542, %v540
    %v579 = vpack.c.b16 %v545, %v543
    %v580 = vpack.c.b16 %v546, %v544
    %v581 = vpack.c.b16 %v549, %v547
    %v582 = vpack.c.b16 %v550, %v548
    %615 = vmatprep.subr.bf16.mxu0 %v552
    %616 = vmatpush1.bf16.msra.mxu0 %v551
    %617 = vmatprep.subr.bf16.mxu0 %v554
    %618 = vmatpush1.bf16.msra.mxu0 %v553
    %619 = vmatprep.subr.bf16.mxu0 %v556
    %620 = vmatpush1.bf16.msra.mxu0 %v555
    %621 = vmatprep.subr.bf16.mxu0 %v558
    %622 = vmatpush1.bf16.msra.mxu0 %v557
    %623 = vmatprep.subr.bf16.mxu0 %v560
    %624 = vmatpush1.bf16.msra.mxu0 %v559
    %625 = vmatprep.subr.bf16.mxu0 %v562
    %626 = vmatpush1.bf16.msra.mxu0 %v561
    %627 = vmatprep.subr.bf16.mxu0 %v564
    %628 = vmatpush1.bf16.msra.mxu0 %v563
    %629 = vmatprep.subr.bf16.mxu0 %v566
    %630 = vmatpush1.bf16.msra.mxu0 %v565
    %631 = vmatprep.subr.bf16.mxu0 %v568
    %632 = vmatpush1.bf16.msra.mxu0 %v567
    %633 = vmatprep.subr.bf16.mxu0 %v570
    %634 = vmatpush1.bf16.msra.mxu0 %v569
    %635 = vmatprep.subr.bf16.mxu0 %v572
    %636 = vmatpush1.bf16.msra.mxu0 %v571
    %637 = vmatprep.subr.bf16.mxu0 %v574
    %638 = vmatpush1.bf16.msra.mxu0 %v573
    %639 = vmatprep.subr.bf16.mxu0 %v576
    %640 = vmatpush1.bf16.msra.mxu0 %v575
    %641 = vmatprep.subr.bf16.mxu0 %v578
    %642 = vmatpush1.bf16.msra.mxu0 %v577
    %643 = vmatprep.subr.bf16.mxu0 %v580
    %644 = vmatpush1.bf16.msra.mxu0 %v579
    %645 = vmatprep.subr.bf16.mxu0 %v582
    %646 = vmatpush1.bf16.msra.mxu0 %v581
    %647 = vmatprep.mubr.bf16.mxu0 %v408
    %648 = vmatmul.mubr.bf16.gmra.mrb[0].mxu0 %v407
    %v649 = vpop.f32.mrb[0].mxu0
    %v650 = vadd.f32 %v448, %v649
    %v651 = vpop.f32.mrb[0].mxu0
    %v652 = vadd.f32 %v452, %v651
    %v653 = vpop.f32.mrb[0].mxu0
    %v654 = vpop.f32.mrb[0].mxu0
    %655 = vdwg.mxu0
    %v656 = vmax.f32 %v650, 0.0
    %v657 = vmax.f32 %v652, 0.0
    %v658 = vld [vmem:[#allocation11] sm:$0xff]
    %v659 = vld [vmem:[#allocation11 + $0x8] sm:$0xff]
    %v660 = vld [vmem:[#allocation11 + $0x10] sm:$0xff]
    %v661 = vld [vmem:[#allocation11 + $0x18] sm:$0xff]
    %v662 = vld [vmem:[#allocation11 + $0x20] sm:$0xff]
    %v663 = vld [vmem:[#allocation11 + $0x28] sm:$0xff]
    %v664 = vld [vmem:[#allocation11 + $0x30] sm:$0xff]
    %v665 = vld [vmem:[#allocation11 + $0x38] sm:$0xff]
    %v666 = vld [vmem:[#allocation11 + $0x40] sm:$0xff]
    %v667 = vld [vmem:[#allocation11 + $0x48] sm:$0xff]
    %v668 = vld [vmem:[#allocation11 + $0x50] sm:$0xff]
    %v669 = vld [vmem:[#allocation11 + $0x58] sm:$0xff]
    %v670 = vld [vmem:[#allocation11 + $0x60] sm:$0xff]
    %v671 = vld [vmem:[#allocation11 + $0x68] sm:$0xff]
    %v672 = vld [vmem:[#allocation11 + $0x70] sm:$0xff]
    %v673 = vld [vmem:[#allocation11 + $0x78] sm:$0xff]
    %v674 = vld [vmem:[#allocation11 + $0x80] sm:$0xff]
    %v675 = vld [vmem:[#allocation11 + $0x88] sm:$0xff]
    %v676 = vld [vmem:[#allocation11 + $0x90] sm:$0xff]
    %v677 = vld [vmem:[#allocation11 + $0x98] sm:$0xff]
    %v678 = vld [vmem:[#allocation11 + $0xa0] sm:$0xff]
    %v679 = vld [vmem:[#allocation11 + $0xa8] sm:$0xff]
    %v680 = vld [vmem:[#allocation11 + $0xb0] sm:$0xff]
    %v681 = vld [vmem:[#allocation11 + $0xb8] sm:$0xff]
    %v682 = vld [vmem:[#allocation11 + $0xc0] sm:$0xff]
    %v683 = vld [vmem:[#allocation11 + $0xc8] sm:$0xff]
    %v684 = vld [vmem:[#allocation11 + $0xd0] sm:$0xff]
    %v685 = vld [vmem:[#allocation11 + $0xd8] sm:$0xff]
    %v686 = vld [vmem:[#allocation11 + $0xe0] sm:$0xff]
    %v687 = vld [vmem:[#allocation11 + $0xe8] sm:$0xff]
    %v688 = vld [vmem:[#allocation11 + $0xf0] sm:$0xff]
    %v689 = vld [vmem:[#allocation11 + $0xf8] sm:$0xff]
    %v690 = vld [vmem:[%s8] sm:$0x3]
    %v692 = vlaneseq
    %v693 = vshrl.u32 %v692, 7
    %v694 = vsub.s32 0, %v693
    %v695 = vrot.slane %v690, %v694
    %v696 = vlaneseq
    %v697 = vshrl.u32 %v696, 7
    %v698 = vsub.s32 1, %v697
    %v699 = vrot.slane %v690, %v698
    %v734 = vunpack.c.l.b16 %v658
    %v735 = vunpack.c.h.b16 %v658
    %v736 = vunpack.c.l.b16 %v659
    %v737 = vunpack.c.h.b16 %v659
    %v738 = vunpack.c.l.b16 %v660
    %v739 = vunpack.c.h.b16 %v660
    %v740 = vunpack.c.l.b16 %v661
    %v741 = vunpack.c.h.b16 %v661
    %v742 = vunpack.c.l.b16 %v662
    %v743 = vunpack.c.h.b16 %v662
    %v744 = vunpack.c.l.b16 %v663
    %v745 = vunpack.c.h.b16 %v663
    %v746 = vunpack.c.l.b16 %v664
    %v747 = vunpack.c.h.b16 %v664
    %v748 = vunpack.c.l.b16 %v665
    %v749 = vunpack.c.h.b16 %v665
    %v750 = vunpack.c.l.b16 %v666
    %v751 = vunpack.c.h.b16 %v666
    %v752 = vunpack.c.l.b16 %v667
    %v753 = vunpack.c.h.b16 %v667
    %v754 = vunpack.c.l.b16 %v668
    %v755 = vunpack.c.h.b16 %v668
    %v756 = vunpack.c.l.b16 %v669
    %v757 = vunpack.c.h.b16 %v669
    %v758 = vunpack.c.l.b16 %v670
    %v759 = vunpack.c.h.b16 %v670
    %v760 = vunpack.c.l.b16 %v671
    %v761 = vunpack.c.h.b16 %v671
    %v762 = vunpack.c.l.b16 %v672
    %v763 = vunpack.c.h.b16 %v672
    %v764 = vunpack.c.l.b16 %v673
    %v765 = vunpack.c.h.b16 %v673
    %v766 = vunpack.c.l.b16 %v674
    %v767 = vunpack.c.h.b16 %v674
    %v768 = vunpack.c.l.b16 %v675
    %v769 = vunpack.c.h.b16 %v675
    %v770 = vunpack.c.l.b16 %v676
    %v771 = vunpack.c.h.b16 %v676
    %v772 = vunpack.c.l.b16 %v677
    %v773 = vunpack.c.h.b16 %v677
    %v774 = vunpack.c.l.b16 %v678
    %v775 = vunpack.c.h.b16 %v678
    %v776 = vunpack.c.l.b16 %v679
    %v777 = vunpack.c.h.b16 %v679
    %v778 = vunpack.c.l.b16 %v680
    %v779 = vunpack.c.h.b16 %v680
    %v780 = vunpack.c.l.b16 %v681
    %v781 = vunpack.c.h.b16 %v681
    %v782 = vunpack.c.l.b16 %v682
    %v783 = vunpack.c.h.b16 %v682
    %v784 = vunpack.c.l.b16 %v683
    %v785 = vunpack.c.h.b16 %v683
    %v786 = vunpack.c.l.b16 %v684
    %v787 = vunpack.c.h.b16 %v684
    %v788 = vunpack.c.l.b16 %v685
    %v789 = vunpack.c.h.b16 %v685
    %v790 = vunpack.c.l.b16 %v686
    %v791 = vunpack.c.h.b16 %v686
    %v792 = vunpack.c.l.b16 %v687
    %v793 = vunpack.c.h.b16 %v687
    %v794 = vunpack.c.l.b16 %v688
    %v795 = vunpack.c.h.b16 %v688
    %v796 = vunpack.c.l.b16 %v689
    %v797 = vunpack.c.h.b16 %v689
    %v798 = vpack.c.b16 %v736, %v734
    %v799 = vpack.c.b16 %v737, %v735
    %v800 = vpack.c.b16 %v740, %v738
    %v801 = vpack.c.b16 %v741, %v739
    %v802 = vpack.c.b16 %v744, %v742
    %v803 = vpack.c.b16 %v745, %v743
    %v804 = vpack.c.b16 %v748, %v746
    %v805 = vpack.c.b16 %v749, %v747
    %v806 = vpack.c.b16 %v752, %v750
    %v807 = vpack.c.b16 %v753, %v751
    %v808 = vpack.c.b16 %v756, %v754
    %v809 = vpack.c.b16 %v757, %v755
    %v810 = vpack.c.b16 %v760, %v758
    %v811 = vpack.c.b16 %v761, %v759
    %v812 = vpack.c.b16 %v764, %v762
    %v813 = vpack.c.b16 %v765, %v763
    %v814 = vpack.c.b16 %v768, %v766
    %v815 = vpack.c.b16 %v769, %v767
    %v816 = vpack.c.b16 %v772, %v770
    %v817 = vpack.c.b16 %v773, %v771
    %v818 = vpack.c.b16 %v776, %v774
    %v819 = vpack.c.b16 %v777, %v775
    %v820 = vpack.c.b16 %v780, %v778
    %v821 = vpack.c.b16 %v781, %v779
    %v822 = vpack.c.b16 %v784, %v782
    %v823 = vpack.c.b16 %v785, %v783
    %v824 = vpack.c.b16 %v788, %v786
    %v825 = vpack.c.b16 %v789, %v787
    %v826 = vpack.c.b16 %v792, %v790
    %v827 = vpack.c.b16 %v793, %v791
    %v828 = vpack.c.b16 %v796, %v794
    %v829 = vpack.c.b16 %v797, %v795
    %862 = vmatprep.subr.bf16.mxu0 %v799
    %863 = vmatpush1.bf16.msra.mxu0 %v798
    %864 = vmatprep.subr.bf16.mxu0 %v801
    %865 = vmatpush1.bf16.msra.mxu0 %v800
    %866 = vmatprep.subr.bf16.mxu0 %v803
    %867 = vmatpush1.bf16.msra.mxu0 %v802
    %868 = vmatprep.subr.bf16.mxu0 %v805
    %869 = vmatpush1.bf16.msra.mxu0 %v804
    %870 = vmatprep.subr.bf16.mxu0 %v807
    %871 = vmatpush1.bf16.msra.mxu0 %v806
    %872 = vmatprep.subr.bf16.mxu0 %v809
    %873 = vmatpush1.bf16.msra.mxu0 %v808
    %874 = vmatprep.subr.bf16.mxu0 %v811
    %875 = vmatpush1.bf16.msra.mxu0 %v810
    %876 = vmatprep.subr.bf16.mxu0 %v813
    %877 = vmatpush1.bf16.msra.mxu0 %v812
    %878 = vmatprep.subr.bf16.mxu0 %v815
    %879 = vmatpush1.bf16.msra.mxu0 %v814
    %880 = vmatprep.subr.bf16.mxu0 %v817
    %881 = vmatpush1.bf16.msra.mxu0 %v816
    %882 = vmatprep.subr.bf16.mxu0 %v819
    %883 = vmatpush1.bf16.msra.mxu0 %v818
    %884 = vmatprep.subr.bf16.mxu0 %v821
    %885 = vmatpush1.bf16.msra.mxu0 %v820
    %886 = vmatprep.subr.bf16.mxu0 %v823
    %887 = vmatpush1.bf16.msra.mxu0 %v822
    %888 = vmatprep.subr.bf16.mxu0 %v825
    %889 = vmatpush1.bf16.msra.mxu0 %v824
    %890 = vmatprep.subr.bf16.mxu0 %v827
    %891 = vmatpush1.bf16.msra.mxu0 %v826
    %892 = vmatprep.subr.bf16.mxu0 %v829
    %893 = vmatpush1.bf16.msra.mxu0 %v828
    %894 = vmatprep.mubr.bf16.mxu0 %v410
    %895 = vmatmul.mubr.bf16.gmra.mrb[0].mxu0 %v409
    %v896 = vpop.f32.mrb[0].mxu0
    %v897 = vadd.f32 %v695, %v896
    %v898 = vpop.f32.mrb[0].mxu0
    %v899 = vadd.f32 %v699, %v898
    %v900 = vpop.f32.mrb[0].mxu0
    %v901 = vpop.f32.mrb[0].mxu0
    %902 = vdwg.mxu0
    %v903 = vmax.f32 %v897, 0.0
    %v904 = vmax.f32 %v899, 0.0
    %v905 = vld [vmem:[%s9] sm:$0xf]
    %v907 = vlaneseq
    %v908 = vshrl.u32 %v907, 7
    %v909 = vsub.s32 0, %v908
    %v910 = vrot.slane %v905, %v909
    %v911 = vlaneseq
    %v912 = vshrl.u32 %v911, 7
    %v913 = vsub.s32 2, %v912
    %v914 = vrot.slane %v905, %v913
    %v917 = vlaneseq
    %v918 = vshrl.u32 %v917, 7
    %v919 = vsub.s32 0, %v918
    %v920 = vrot.slane %v910, %v919
    %v921 = vlaneseq
    %v922 = vshrl.u32 %v921, 7
    %v923 = vsub.s32 0, %v922
    %v924 = vrot.slane %v914, %v923
    %v925 = vmul.f32 %v656, %v920
    %v926 = vmul.f32 %v657, %v924
    %v927 = vadd.f32 %v925, %v926
    %928 = vadd.xlane.f32.xlu0 %v927
    %v929 = vpop.xlane.xlu0 %928
    %s930 = sld [smem:[#allocation13]]
    %v931 = vstv %s930
    %v932 = vadd.f32 %v929, %v931
    %v933 = vlaneseq
    %v934 = vshrl.u32 %v933, 7
    %v935 = vsub.s32 1, %v934
    %v936 = vrot.slane %v905, %v935
    %v937 = vlaneseq
    %v938 = vshrl.u32 %v937, 7
    %v939 = vsub.s32 3, %v938
    %v940 = vrot.slane %v905, %v939
    %v943 = vlaneseq
    %v944 = vshrl.u32 %v943, 7
    %v945 = vsub.s32 1, %v944
    %v946 = vrot.slane %v936, %v945
    %v947 = vlaneseq
    %v948 = vshrl.u32 %v947, 7
    %v949 = vsub.s32 1, %v948
    %v950 = vrot.slane %v940, %v949
    %v951 = vmul.f32 %v903, %v946
    %v952 = vmul.f32 %v904, %v950
    %v953 = vadd.f32 %v951, %v952
    %954 = vadd.xlane.f32.xlu0 %v953
    %v955 = vpop.xlane.xlu0 %954
    %s956 = sld [smem:[#allocation13 + $0x1]]
    %v957 = vstv %s956
    %v958 = vadd.f32 %v955, %v957
    %vm959 = vcmask 7168
    %960 = vst.msk [vmem:[%s11] sm:$0xff] %vm959, %v932
    %vm961 = vcmask 15368
    %962 = vst.msk [vmem:[%s11] sm:$0xff] %vm961, %v958
    // Predicated region
    $region74: #{critic_forward.1} parent=1 // pred_check
      _
    $region75: #{critic_forward.1} parent=1 // pred_check_branch
      %964 = sbr.rel (0) target = $region77
    $region76: #{critic_forward.1} parent=1 // pred_region
      _
    $region77: #{critic_forward.1} parent=1 // pred_fallthru
      _
    // Predicated region
    $region78: #{critic_forward.1} parent=1 // pred_check
      _
    $region79: #{critic_forward.1} parent=1 // pred_check_branch
      %966 = sbr.rel (0) target = $region81
    $region80: #{critic_forward.1} parent=1 // pred_region
      _
    $region81: #{critic_forward.1} parent=1 // pred_fallthru
      _
    %967 = vsyncpa [#allocation3], 1
    %968 = vsyncpa [#allocation6], 1
    %969 = vsyncpa [#allocation9], 1
    %970 = vsyncpa [#allocation12], 1
    %971 = vsyncpa [#allocation4], 1

</llo_original>
